<compile_context>
chip_gen: v7x
topology: tpu7x:2x2x1
jax: 0.10.0
libtpu: 0.0.40
codegen_flags: <defaults>
</compile_context>

<pallas_src>
import functools

import jax
import jax.numpy as jnp
from jax.experimental import pallas as pl
from jax.experimental.pallas import tpu as pltpu

_SUBLANES = 8


def _num_tensorcores():
    """Best-effort TensorCores-per-chip detection (2 on v7x, else 1)."""
    try:
        info = pltpu.get_tpu_info()
        for attr in ("num_cores", "core_count", "num_tensorcores",
                     "tensorcore_count", "cores_per_chip"):
            n = getattr(info, attr, None)
            if n:
                return max(1, min(2, int(n)))
    except Exception:
        pass
    return 1


def _bce_ls_neg_elem(p, t, base, scale):
    """g = -(per-element smoothed BCE), computed in f32."""
    p = p.astype(jnp.float32)
    t = t.astype(jnp.float32)
    log_p = jnp.maximum(jnp.log(p), -100.0)
    log_1mp = jnp.maximum(jnp.log(1.0 - p), -100.0)
    t_s = base + t * scale
    return t_s * (log_p - log_1mp) + log_1mp


def _bce_ls_kernel(p_ref, t_ref, o_ref, *, base, scale):
    i = pl.program_id(1)  # row-tile index within this core's split (reduction axis)

    # Output block index depends only on the split axis -> resident across i:
    # use it directly as the accumulator.
    @pl.when(i == 0)
    def _():
        o_ref[...] = jnp.zeros_like(o_ref)

    g = _bce_ls_neg_elem(p_ref[...], t_ref[...], base, scale)

    # Keep the reduction vreg-shaped: sum groups of 8 rows with pure VPU adds,
    # leaving an (8, C) partial.  No cross-lane (XLU) reduce in the hot loop.
    rows, cols = g.shape
    partial = g.reshape(rows // _SUBLANES, _SUBLANES, cols).sum(axis=0)
    o_ref[...] += partial[None, :, :]


def bce_loss_with_label_smoothing(clip_prob, frame_prob, tar, label_smoothing=0.1,
                                  *, block_rows=None, num_splits=None,
                                  small_count_threshold=1 << 20):
    """Mean BCE with label smoothing. frame_prob is unused (as in the reference)."""
    del frame_prob  # unused by the reference forward()

    n_classes = clip_prob.shape[-1]
    count = int(clip_prob.size)

    ls = float(label_smoothing)
    base = ls / (n_classes - 1)
    scale = 1.0 - ls - base
    inv_count = 1.0 / count

    def dense():
        # Fused pure-JAX path (tiny inputs / degenerate tilings).
        return -jnp.mean(_bce_ls_neg_elem(clip_prob, tar, base, scale))

    if count < int(small_count_threshold):
        return dense()

    # Natural 2-D view; collapsing leading dims keeps the class dim last (no
    # lane relayout, no pad).
    p2 = clip_prob.reshape(-1, n_classes)
    t2 = tar.reshape(-1, n_classes)
    rows_total, ncls = p2.shape

    # Row-tile sizing: ~4 MiB per input buffer (DMA-efficiency plateau).
    itemsize = max(int(jnp.dtype(p2.dtype).itemsize), int(jnp.dtype(t2.dtype).itemsize))
    bytes_per_row = ncls * itemsize
    if block_rows is None:
        tb = max(_SUBLANES, ((4 << 20) // max(bytes_per_row, 1)) // _SUBLANES * _SUBLANES)
    else:
        tb = max(_SUBLANES, int(block_rows) // _SUBLANES * _SUBLANES)
    tb = min(tb, rows_total // _SUBLANES * _SUBLANES)

    if tb < _SUBLANES:
        return dense()

    n_full = rows_total // tb
    if n_full == 0:
        return dense()

    if num_splits is None:
        num_splits = _num_tensorcores()
    num_splits = max(1, min(int(num_splits), n_full))

    nbps = n_full // num_splits            # row-tiles per core split
    kernel_rows = num_splits * nbps * tb   # rows handled by the kernel

    tile_p = tb * ncls * int(jnp.dtype(p2.dtype).itemsize)
    tile_t = tb * ncls * int(jnp.dtype(t2.dtype).itemsize)
    out_bytes = num_splits * _SUBLANES * ncls * 4
    if 2 * (tile_p + tile_t) > (40 << 20):
        # Pathologically wide class dim; not a realistic loss shape.
        return dense()
    vmem_limit_bytes = int(min(max(2 * (tile_p + tile_t) + out_bytes + (8 << 20),
                                   16 << 20), 56 << 20))

    if num_splits > 1:
        dims = (getattr(pltpu, "CORE_PARALLEL", "parallel"),
                getattr(pltpu, "ARBITRARY", "arbitrary"))
    else:
        dims = ("arbitrary", "arbitrary")

    partials = pl.pallas_call(
        functools.partial(_bce_ls_kernel, base=base, scale=scale),
        out_shape=jax.ShapeDtypeStruct((num_splits, _SUBLANES, ncls), jnp.float32),
        grid=(num_splits, nbps),
        in_specs=[
            pl.BlockSpec((tb, ncls), lambda c, i: (c * nbps + i, 0)),
            pl.BlockSpec((tb, ncls), lambda c, i: (c * nbps + i, 0)),
        ],
        out_specs=pl.BlockSpec((1, _SUBLANES, ncls), lambda c, i: (c, 0, 0)),
        compiler_params=pltpu.CompilerParams(
            dimension_semantics=dims,
            vmem_limit_bytes=vmem_limit_bytes,
        ),
    )(p2, t2)

    total = jnp.sum(partials, dtype=jnp.float32)

    # Ragged tail (< num_splits * tb rows): fused pure-JAX epilogue, no pad,
    # no in-kernel mask.
    if kernel_rows < rows_total:
        total = total + jnp.sum(
            _bce_ls_neg_elem(p2[kernel_rows:], t2[kernel_rows:], base, scale),
            dtype=jnp.float32)

    return -total * inv_count


def _reference(clip_prob, frame_prob, tar, label_smoothing=0.1):
    del frame_prob
    n_classes = clip_prob.shape[-1]
    t_s = tar * (1 - label_smoothing) + (1 - tar) * (label_smoothing / (n_classes - 1))
    log_p = jnp.maximum(jnp.log(clip_prob), -100.0)
    log_1mp = jnp.maximum(jnp.log(1.0 - clip_prob), -100.0)
    return jnp.mean(-(t_s * log_p + (1 - t_s) * log_1mp))


if __name__ == "__main__":
    key = jax.random.PRNGKey(0)
    k1, k2, k3, k4, k5, k6, k7 = jax.random.split(key, 7)

    # Shapes consistent with the module: (batch, n_classes) clip probs,
    # (batch, time, n_classes) frame probs (unused), multi-hot targets.
    batch, time_steps, n_classes = 4, 8, 32
    clip_prob = jax.nn.sigmoid(jax.random.normal(k1, (batch, n_classes), jnp.float32))
    frame_prob = jax.nn.sigmoid(
        jax.random.normal(k2, (batch, time_steps, n_classes), jnp.float32))
    tar = (jax.random.uniform(k3, (batch, n_classes)) > 0.5).astype(jnp.float32)

    # 1) Default call on the tiny shape: takes the fused pure-JAX fast path.
    loss = bce_loss_with_label_smoothing(clip_prob, frame_prob, tar, 0.1)
    loss = jax.block_until_ready(loss)
    ref = _reference(clip_prob, frame_prob, tar, 0.1)
    assert jnp.allclose(loss, ref, rtol=1e-5, atol=1e-5), (loss, ref)

    # 2) Force the Pallas path (single tile, odd n_classes -> full-C blocks).
    b2, c2 = 16, 527
    clip2 = jax.nn.sigmoid(jax.random.normal(k4, (b2, c2), jnp.float32))
    tar2 = (jax.random.uniform(k5, (b2, c2)) > 0.5).astype(jnp.float32)
    loss2 = bce_loss_with_label_smoothing(clip2, None, tar2, 0.1,
                                          small_count_threshold=0)
    loss2 = jax.block_until_ready(loss2)
    ref2 = _reference(clip2, None, tar2, 0.1)
    assert jnp.allclose(loss2, ref2, rtol=1e-4, atol=1e-4), (loss2, ref2)

    # 3) Force the Pallas path with several row tiles + ragged-tail epilogue,
    #    and bf16 targets (lossless 0/1 multi-hot) streamed at half the bytes.
    b3, c3 = 200, 136
    clip3 = jax.nn.sigmoid(jax.random.normal(k6, (b3, c3), jnp.float32))
    tar3 = (jax.random.uniform(k7, (b3, c3)) > 0.5).astype(jnp.bfloat16)
    loss3 = bce_loss_with_label_smoothing(clip3, None, tar3, 0.1,
                                          small_count_threshold=0, block_rows=16)
    loss3 = jax.block_until_ready(loss3)
    ref3 = _reference(clip3, None, tar3.astype(jnp.float32), 0.1)
    assert jnp.allclose(loss3, ref3, rtol=1e-4, atol=1e-4), (loss3, ref3)

    print("KERNEL_OK")
</pallas_src>

<mosaic_0001>
module attributes {stable_mosaic.version = 11 : i64} {
  func.func @_bce_ls_kernel(%arg0: i32, %arg1: i32, %arg2: memref<16x527xf32, #tpu.memory_space<vmem>>, %arg3: memref<16x527xf32, #tpu.memory_space<vmem>>, %arg4: memref<1x8x527xf32, #tpu.memory_space<vmem>>) attributes {dimension_semantics = [#tpu.dimension_semantics<arbitrary>, #tpu.dimension_semantics<arbitrary>], iteration_bounds = array<i64: 1, 1>, scalar_prefetch = 0 : i64, scratch_operands = 0 : i64, tpu.core_type = #tpu.core_type<tc>, window_params = [{transform_indices = @transform_0, window_bounds = array<i64: 16, 527>}, {transform_indices = @transform_1, window_bounds = array<i64: 16, 527>}, {transform_indices = @transform_2, window_bounds = array<i64: 1, 8, 527>}]} {
    %c0_i32 = arith.constant 0 : i32
    %0 = arith.cmpi eq, %arg1, %c0_i32 : i32
    %1 = arith.extui %0 : i1 to i32
    %c0_i32_0 = arith.constant 0 : i32
    %2 = arith.cmpi ne, %1, %c0_i32_0 : i32
    scf.if %2 {
      %cst_15 = arith.constant 0.000000e+00 : f32
      %26 = vector.broadcast %cst_15 : f32 to vector<1x8x527xf32>
      %c0_16 = arith.constant 0 : index
      %c0_17 = arith.constant 0 : index
      %c0_18 = arith.constant 0 : index
      %27 = vector.load %arg4[%c0_16, %c0_17, %c0_18] : memref<1x8x527xf32, #tpu.memory_space<vmem>>, vector<1x8x527xf32>
      tpu.vector_store %arg4[%c0_16, %c0_17, %c0_18], %26 {strides = array<i32>} : memref<1x8x527xf32, #tpu.memory_space<vmem>>, vector<1x8x527xf32>,
    } else {
    }
    %c0 = arith.constant 0 : index
    %c0_1 = arith.constant 0 : index
    %3 = vector.load %arg2[%c0, %c0_1] : memref<16x527xf32, #tpu.memory_space<vmem>>, vector<16x527xf32>
    %c0_2 = arith.constant 0 : index
    %c0_3 = arith.constant 0 : index
    %4 = vector.load %arg3[%c0_2, %c0_3] : memref<16x527xf32, #tpu.memory_space<vmem>>, vector<16x527xf32>
    %5 = math.log %3 : vector<16x527xf32>
    %cst = arith.constant -1.000000e+02 : f32
    %6 = vector.broadcast %cst : f32 to vector<16x527xf32>
    %7 = arith.maximumf %5, %6 : vector<16x527xf32>
    %cst_4 = arith.constant 1.000000e+00 : f32
    %8 = vector.broadcast %cst_4 : f32 to vector<16x527xf32>
    %9 = arith.subf %8, %3 : vector<16x527xf32>
    %10 = math.log %9 : vector<16x527xf32>
    %cst_5 = arith.constant -1.000000e+02 : f32
    %11 = vector.broadcast %cst_5 : f32 to vector<16x527xf32>
    %12 = arith.maximumf %10, %11 : vector<16x527xf32>
    %cst_6 = arith.constant 0.899809896 : f32
    %13 = vector.broadcast %cst_6 : f32 to vector<16x527xf32>
    %14 = arith.mulf %4, %13 : vector<16x527xf32>
    %cst_7 = arith.constant 1.90114064E-4 : f32
    %15 = vector.broadcast %cst_7 : f32 to vector<16x527xf32>
    %16 = arith.addf %15, %14 : vector<16x527xf32>
    %17 = arith.subf %7, %12 : vector<16x527xf32>
    %18 = arith.mulf %16, %17 : vector<16x527xf32>
    %19 = arith.addf %18, %12 : vector<16x527xf32>
    %20 = vector.shape_cast %19 : vector<16x527xf32> to vector<2x8x527xf32>
    %cst_8 = arith.constant dense<0.000000e+00> : vector<8x527xf32>
    %21 = vector.multi_reduction <add>, %20, %cst_8 [0] : vector<2x8x527xf32> to vector<8x527xf32>
    %c0_9 = arith.constant 0 : index
    %c0_10 = arith.constant 0 : index
    %c0_11 = arith.constant 0 : index
    %22 = vector.load %arg4[%c0_9, %c0_10, %c0_11] : memref<1x8x527xf32, #tpu.memory_space<vmem>>, vector<1x8x527xf32>
    %23 = vector.shape_cast %21 : vector<8x527xf32> to vector<1x8x527xf32>
    %24 = arith.addf %22, %23 : vector<1x8x527xf32>
    %c0_12 = arith.constant 0 : index
    %c0_13 = arith.constant 0 : index
    %c0_14 = arith.constant 0 : index
    %25 = vector.load %arg4[%c0_12, %c0_13, %c0_14] : memref<1x8x527xf32, #tpu.memory_space<vmem>>, vector<1x8x527xf32>
    tpu.vector_store %arg4[%c0_12, %c0_13, %c0_14], %24 {strides = array<i32>} : memref<1x8x527xf32, #tpu.memory_space<vmem>>, vector<1x8x527xf32>,
    return
  }
  func.func @transform_0(%arg0: i32, %arg1: i32) -> (i32, i32) {
    %c1_i32 = arith.constant 1 : i32
    %0 = arith.muli %arg0, %c1_i32 : i32
    %1 = arith.addi %0, %arg1 : i32
    %c0_i32 = arith.constant 0 : i32
    %c0_i32_0 = arith.constant 0 : i32
    return %1, %c0_i32 : i32, i32
  }
  func.func @transform_1(%arg0: i32, %arg1: i32) -> (i32, i32) {
    %c1_i32 = arith.constant 1 : i32
    %0 = arith.muli %arg0, %c1_i32 : i32
    %1 = arith.addi %0, %arg1 : i32
    %c0_i32 = arith.constant 0 : i32
    %c0_i32_0 = arith.constant 0 : i32
    return %1, %c0_i32 : i32, i32
  }
  func.func @transform_2(%arg0: i32, %arg1: i32) -> (i32, i32, i32) {
    %c0_i32 = arith.constant 0 : i32
    %c0_i32_0 = arith.constant 0 : i32
    %c0_i32_1 = arith.constant 0 : i32
    return %arg0, %c0_i32, %c0_i32_0 : i32, i32, i32
  }
}

</mosaic_0001>

<llo_original>
// kernel: tpu_custom_call.1
$region0: #{tpu_custom_call.1}
  #allocation0 [shape = 'u32[]', space=smem, size = 0x4, offset = 0x4, fixed_abs, tag = 'smem constant byte address 0x4 - core index']
  #allocation1 [shape = 'u32[144,128]{1,0:T(1,128)}', space=vmem, size = 0x12000, scoped, tag = 'internal scratch']
  %s0 = inlined_call_operand.hbm [shape: f32[16,527], index: 0, kind: input, shape index: {}]
  %s1 = inlined_call_operand.hbm [shape: f32[16,527], index: 1, kind: input, shape index: {}]
  %s2 = inlined_call_operand.hbm [shape: f32[1,8,527], index: 2, kind: output, shape index: {}]
  %s3 = sld [smem:[#allocation0]]
  $region30: #{tpu_custom_call.1} parent=0
    _
  %s5 = ssub.s32 1, %s3
  %s6 = scalar_select 0, %s5, %s3
  $region1: #{tpu_custom_call.1} parent=0
    #allocation2 [shape = 'u8[40960]{0}', space=vmem, size = 0xa000, scoped, tag = 'input window, operand 0, single buffered']
    #allocation3 [shape = 's32[1]{0}', space=sflag, size = 0x4, scoped, tag = 'scoped memory for tpu_custom_call.1']
    #allocation4 [shape = 's32[1]{0}', space=sflag, size = 0x4, scoped, tag = 'scoped memory for tpu_custom_call.1']
    #allocation5 [shape = 'u8[40960]{0}', space=vmem, size = 0xa000, scoped, tag = 'input window, operand 1, single buffered']
    #allocation6 [shape = 's32[1]{0}', space=sflag, size = 0x4, scoped, tag = 'scoped memory for tpu_custom_call.1']
    #allocation7 [shape = 'u8[20480]{0}', space=vmem, size = 0x5000, scoped, tag = 'output window, operand 0, single buffered']
    %7 = vsyncpa [#allocation3], 0
    %8 = vsyncpa [#allocation6], 0
    %9 = vsyncpa [#allocation4], 0
    // Predicated region
    $region2: #{tpu_custom_call.1} parent=1 // pred_check
      _
    $region3: #{tpu_custom_call.1} parent=1 // pred_check_branch
      %11 = sbr.rel (0) target = $region5
    $region4: #{tpu_custom_call.1} parent=1 // pred_region
      %s12 = sadd.s32 0, 0
      %s13 = smul.u32 2, %s12
      %s15 = ssub.s32 1280, 1280
      %16 = vsyncadd [#allocation3], %s15
      %s17 = smul.addr %s13, 5
      %s18 = smul.addr %s17, 128
      %s19 = scalar_lea.hbm %s0, %s18
      %s20 = sshll.u32 [#allocation2], 4
      %s21 = int_to_ptr.vmem [resolvable:$true] %s20
      %26 = dma.hbm_to_vmem [thread:$0]  %s19, 1280, %s21, [#allocation3], 640, 640, 40
    $region5: #{tpu_custom_call.1} parent=1 // pred_fallthru
      _
    // Predicated region
    $region6: #{tpu_custom_call.1} parent=1 // pred_check
      _
    $region7: #{tpu_custom_call.1} parent=1 // pred_check_branch
      %28 = sbr.rel (0) target = $region9
    $region8: #{tpu_custom_call.1} parent=1 // pred_region
      %s29 = sadd.s32 0, 0
      %s30 = smul.u32 2, %s29
      %s32 = ssub.s32 1280, 1280
      %33 = vsyncadd [#allocation6], %s32
      %s34 = smul.addr %s30, 5
      %s35 = smul.addr %s34, 128
      %s36 = scalar_lea.hbm %s1, %s35
      %s37 = sshll.u32 [#allocation5], 4
      %s38 = int_to_ptr.vmem [resolvable:$true] %s37
      %43 = dma.hbm_to_vmem [thread:$0]  %s36, 1280, %s38, [#allocation6], 640, 640, 40
    $region9: #{tpu_custom_call.1} parent=1 // pred_fallthru
      _
    // Predicated region
    $region10: #{tpu_custom_call.1} parent=1 // pred_check
      _
    $region11: #{tpu_custom_call.1} parent=1 // pred_check_branch
      %45 = sbr.rel (0) target = $region13
    $region12: #{tpu_custom_call.1} parent=1 // pred_region
      %46 = dma.done [#allocation3], 1280
    $region13: #{tpu_custom_call.1} parent=1 // pred_fallthru
      _
    // Predicated region
    $region14: #{tpu_custom_call.1} parent=1 // pred_check
      _
    $region15: #{tpu_custom_call.1} parent=1 // pred_check_branch
      %48 = sbr.rel (0) target = $region17
    $region16: #{tpu_custom_call.1} parent=1 // pred_region
      %49 = dma.done [#allocation6], 1280
    $region17: #{tpu_custom_call.1} parent=1 // pred_fallthru
      _
    %s50 = sadd.s32 0, 0
    %s51 = smul.u32 2, %s50
    %s52 = sadd.s32 0, 0
    %s53 = smul.u32 2, %s52
    %p54 = scmp.eq.s32.totalorder 0, 0
    // Predicated region
    $region18: #{tpu_custom_call.1} parent=1 // pred_check
      %p55 = pneg %p54
    $region19: #{tpu_custom_call.1} parent=1 // pred_check_branch
      %57 = sbr.rel (%p55) target = $region21
    $region20: #{tpu_custom_call.1} parent=1 // pred_region
      %58 = vst [vmem:[#allocation7] sm:$0xff] 0.0
      %59 = vst [vmem:[#allocation7 + $0x8] sm:$0xff] 0.0
      %60 = vst [vmem:[#allocation7 + $0x10] sm:$0xff] 0.0
      %61 = vst [vmem:[#allocation7 + $0x18] sm:$0xff] 0.0
      %vm62 = vcmask 121856
      %63 = vst.msk [vmem:[#allocation7 + $0x20] sm:$0xff] %vm62, 0.0
    $region21: #{tpu_custom_call.1} parent=1 // pred_fallthru
      _
    %v64 = vld [vmem:[#allocation2] sm:$0xff]
    %v65 = vld [vmem:[#allocation2 + $0x8] sm:$0xff]
    %v66 = vld [vmem:[#allocation2 + $0x10] sm:$0xff]
    %v67 = vld [vmem:[#allocation2 + $0x18] sm:$0xff]
    %v68 = vld [vmem:[#allocation2 + $0x20] sm:$0xff]
    %v69 = vld [vmem:[#allocation2 + $0x28] sm:$0xff]
    %v70 = vld [vmem:[#allocation2 + $0x30] sm:$0xff]
    %v71 = vld [vmem:[#allocation2 + $0x38] sm:$0xff]
    %v72 = vld [vmem:[#allocation2 + $0x40] sm:$0xff]
    %v73 = vld [vmem:[#allocation2 + $0x48] sm:$0xff]
    %v74 = vld [vmem:[#allocation5] sm:$0xff]
    %v75 = vld [vmem:[#allocation5 + $0x8] sm:$0xff]
    %v76 = vld [vmem:[#allocation5 + $0x10] sm:$0xff]
    %v77 = vld [vmem:[#allocation5 + $0x18] sm:$0xff]
    %v78 = vld [vmem:[#allocation5 + $0x20] sm:$0xff]
    %v79 = vld [vmem:[#allocation5 + $0x28] sm:$0xff]
    %v80 = vld [vmem:[#allocation5 + $0x30] sm:$0xff]
    %v81 = vld [vmem:[#allocation5 + $0x38] sm:$0xff]
    %v82 = vld [vmem:[#allocation5 + $0x40] sm:$0xff]
    %v83 = vld [vmem:[#allocation5 + $0x48] sm:$0xff]
    %v84 = vlog2.pop %v64
    %v85 = vmul.f32 %v84, 0.6931472
    %v86 = vlog2.pop %v65
    %v87 = vmul.f32 %v86, 0.6931472
    %v88 = vlog2.pop %v66
    %v89 = vmul.f32 %v88, 0.6931472
    %v90 = vlog2.pop %v67
    %v91 = vmul.f32 %v90, 0.6931472
    %v92 = vlog2.pop %v68
    %v93 = vmul.f32 %v92, 0.6931472
    %v94 = vlog2.pop %v69
    %v95 = vmul.f32 %v94, 0.6931472
    %v96 = vlog2.pop %v70
    %v97 = vmul.f32 %v96, 0.6931472
    %v98 = vlog2.pop %v71
    %v99 = vmul.f32 %v98, 0.6931472
    %v100 = vlog2.pop %v72
    %v101 = vmul.f32 %v100, 0.6931472
    %v102 = vlog2.pop %v73
    %v103 = vmul.f32 %v102, 0.6931472
    %v104 = vmax.f32 %v85, -100.0
    %v105 = vmax.f32 %v87, -100.0
    %v106 = vmax.f32 %v89, -100.0
    %v107 = vmax.f32 %v91, -100.0
    %v108 = vmax.f32 %v93, -100.0
    %v109 = vmax.f32 %v95, -100.0
    %v110 = vmax.f32 %v97, -100.0
    %v111 = vmax.f32 %v99, -100.0
    %v112 = vmax.f32 %v101, -100.0
    %v113 = vmax.f32 %v103, -100.0
    %v114 = vsub.f32 1.0, %v64
    %v115 = vsub.f32 1.0, %v65
    %v116 = vsub.f32 1.0, %v66
    %v117 = vsub.f32 1.0, %v67
    %v118 = vsub.f32 1.0, %v68
    %v119 = vsub.f32 1.0, %v69
    %v120 = vsub.f32 1.0, %v70
    %v121 = vsub.f32 1.0, %v71
    %v122 = vsub.f32 1.0, %v72
    %v123 = vsub.f32 1.0, %v73
    %v124 = vlog2.pop %v114
    %v125 = vmul.f32 %v124, 0.6931472
    %v126 = vlog2.pop %v115
    %v127 = vmul.f32 %v126, 0.6931472
    %v128 = vlog2.pop %v116
    %v129 = vmul.f32 %v128, 0.6931472
    %v130 = vlog2.pop %v117
    %v131 = vmul.f32 %v130, 0.6931472
    %v132 = vlog2.pop %v118
    %v133 = vmul.f32 %v132, 0.6931472
    %v134 = vlog2.pop %v119
    %v135 = vmul.f32 %v134, 0.6931472
    %v136 = vlog2.pop %v120
    %v137 = vmul.f32 %v136, 0.6931472
    %v138 = vlog2.pop %v121
    %v139 = vmul.f32 %v138, 0.6931472
    %v140 = vlog2.pop %v122
    %v141 = vmul.f32 %v140, 0.6931472
    %v142 = vlog2.pop %v123
    %v143 = vmul.f32 %v142, 0.6931472
    %v144 = vmax.f32 %v125, -100.0
    %v145 = vmax.f32 %v127, -100.0
    %v146 = vmax.f32 %v129, -100.0
    %v147 = vmax.f32 %v131, -100.0
    %v148 = vmax.f32 %v133, -100.0
    %v149 = vmax.f32 %v135, -100.0
    %v150 = vmax.f32 %v137, -100.0
    %v151 = vmax.f32 %v139, -100.0
    %v152 = vmax.f32 %v141, -100.0
    %v153 = vmax.f32 %v143, -100.0
    %v154 = vmul.f32 %v74, 0.8998099
    %v155 = vmul.f32 %v75, 0.8998099
    %v156 = vmul.f32 %v76, 0.8998099
    %v157 = vmul.f32 %v77, 0.8998099
    %v158 = vmul.f32 %v78, 0.8998099
    %v159 = vmul.f32 %v79, 0.8998099
    %v160 = vmul.f32 %v80, 0.8998099
    %v161 = vmul.f32 %v81, 0.8998099
    %v162 = vmul.f32 %v82, 0.8998099
    %v163 = vmul.f32 %v83, 0.8998099
    %v164 = vadd.f32 %v154, 0.00019011406
    %v165 = vadd.f32 %v155, 0.00019011406
    %v166 = vadd.f32 %v156, 0.00019011406
    %v167 = vadd.f32 %v157, 0.00019011406
    %v168 = vadd.f32 %v158, 0.00019011406
    %v169 = vadd.f32 %v159, 0.00019011406
    %v170 = vadd.f32 %v160, 0.00019011406
    %v171 = vadd.f32 %v161, 0.00019011406
    %v172 = vadd.f32 %v162, 0.00019011406
    %v173 = vadd.f32 %v163, 0.00019011406
    %v174 = vsub.f32 %v104, %v144
    %v175 = vsub.f32 %v105, %v145
    %v176 = vsub.f32 %v106, %v146
    %v177 = vsub.f32 %v107, %v147
    %v178 = vsub.f32 %v108, %v148
    %v179 = vsub.f32 %v109, %v149
    %v180 = vsub.f32 %v110, %v150
    %v181 = vsub.f32 %v111, %v151
    %v182 = vsub.f32 %v112, %v152
    %v183 = vsub.f32 %v113, %v153
    %v184 = vmul.f32 %v164, %v174
    %v185 = vmul.f32 %v165, %v175
    %v186 = vmul.f32 %v166, %v176
    %v187 = vmul.f32 %v167, %v177
    %v188 = vmul.f32 %v168, %v178
    %v189 = vmul.f32 %v169, %v179
    %v190 = vmul.f32 %v170, %v180
    %v191 = vmul.f32 %v171, %v181
    %v192 = vmul.f32 %v172, %v182
    %v193 = vmul.f32 %v173, %v183
    %v194 = vadd.f32 %v184, %v144
    %v195 = vadd.f32 %v185, %v145
    %v196 = vadd.f32 %v186, %v146
    %v197 = vadd.f32 %v187, %v147
    %v198 = vadd.f32 %v188, %v148
    %v199 = vadd.f32 %v189, %v149
    %v200 = vadd.f32 %v190, %v150
    %v201 = vadd.f32 %v191, %v151
    %v202 = vadd.f32 %v192, %v152
    %v203 = vadd.f32 %v193, %v153
    %v204 = vadd.f32 %v194, %v199
    %v205 = vadd.f32 %v195, %v200
    %v206 = vadd.f32 %v196, %v201
    %v207 = vadd.f32 %v197, %v202
    %vm208 = vcmask 121856
    %v209 = vsel %vm208, %v198, 0.0
    %v210 = vsel %vm208, %v203, 0.0
    %v211 = vadd.f32 %v209, %v210
    %v212 = vld [vmem:[#allocation7] sm:$0xff]
    %v213 = vld [vmem:[#allocation7 + $0x8] sm:$0xff]
    %v214 = vld [vmem:[#allocation7 + $0x10] sm:$0xff]
    %v215 = vld [vmem:[#allocation7 + $0x18] sm:$0xff]
    %v216 = vld [vmem:[#allocation7 + $0x20] sm:$0xff]
    %v217 = vadd.f32 %v212, %v204
    %v218 = vadd.f32 %v213, %v205
    %v219 = vadd.f32 %v214, %v206
    %v220 = vadd.f32 %v215, %v207
    %v221 = vadd.f32 %v216, %v211
    %222 = vst [vmem:[#allocation7] sm:$0xff] %v217
    %223 = vst [vmem:[#allocation7 + $0x8] sm:$0xff] %v218
    %224 = vst [vmem:[#allocation7 + $0x10] sm:$0xff] %v219
    %225 = vst [vmem:[#allocation7 + $0x18] sm:$0xff] %v220
    %226 = vst.msk [vmem:[#allocation7 + $0x20] sm:$0xff] %vm208, %v221
    // Predicated region
    $region22: #{tpu_custom_call.1} parent=1 // pred_check
      _
    $region23: #{tpu_custom_call.1} parent=1 // pred_check_branch
      %228 = sbr.rel (0) target = $region25
    $region24: #{tpu_custom_call.1} parent=1 // pred_region
      %s230 = ssub.s32 640, 640
      %231 = vsyncadd [#allocation4], %s230
      %s233 = sshll.u32 [#allocation7], 4
      %s234 = int_to_ptr.vmem [resolvable:$true] %s233
      %236 = dma.vmem_to_hbm [thread:$0]  %s234, 640, %s2, [#allocation4]
    $region25: #{tpu_custom_call.1} parent=1 // pred_fallthru
      _
    // Predicated region
    $region26: #{tpu_custom_call.1} parent=1 // pred_check
      _
    $region27: #{tpu_custom_call.1} parent=1 // pred_check_branch
      %238 = sbr.rel (0) target = $region29
    $region28: #{tpu_custom_call.1} parent=1 // pred_region
      %239 = dma.done [#allocation4], 640
    $region29: #{tpu_custom_call.1} parent=1 // pred_fallthru
      _
    %240 = vsyncpa [#allocation3], 1
    %241 = vsyncpa [#allocation6], 1
    %242 = vsyncpa [#allocation4], 1

</llo_original>
